<compile_context>
chip_gen: v5e
topology: v5e:2x2
jax: 0.10.0
libtpu: 0.0.40
codegen_flags: <defaults>
</compile_context>

<pallas_src>
import math

import jax
import jax.numpy as jnp
from jax.experimental import pallas as pl
from jax.experimental.pallas import tpu as pltpu

# ---- static demo config ------------------------------------------------------
FIELD_NUMS = (16, 16)                       # (feature_num0, feature_num1)
# torch.tril(torch.ones(f1, f0), diagonal=-1).sum()
INTERACTION_NUM = sum(min(i, FIELD_NUMS[0]) for i in range(FIELD_NUMS[1]))  # 120
B = 32                                      # demo batch (small)
E = 128                                     # embedding dim (lane-dense output)

# DMA-efficiency knee for mem-bound kernels: aim for ~16 MiB x blocks
# (~256 rows at I=120, E=128, f32), which double-buffers inside v7x's VMEM.
_TARGET_BLOCK_BYTES = 16 << 20
_VMEM_LIMIT_CAP = 48 << 20                  # always legal on v7x (64 MiB/TC)


def fusion_kernel(w_ref, x_ref, o_ref):
    """w_ref: (1, I, E) f32 ; x_ref: (TB, I, E) f32 ; o_ref: (TB, E) f32."""
    # Aligned broadcast-multiply by the pre-broadcast weight, then reduce the
    # interaction axis.  Exact f32 throughout; single full-tile store.
    z = x_ref[...] * w_ref[...]                           # (TB, I, E)
    o_ref[...] = jnp.sum(z, axis=1).astype(o_ref.dtype)   # (TB, E)


def _pick_tb(batch, interactions, emb, itemsize,
             target_block_bytes=_TARGET_BLOCK_BYTES):
    """Largest batch tile dividing `batch` under the DMA block target, keeping
    a grid of >= 2 steps when possible (so both v7x TensorCores get work)."""
    per_row = interactions * emb * itemsize
    max_rows = max(1, target_block_bytes // per_row)
    divisors = [d for d in range(1, batch + 1)
                if batch % d == 0 and d <= max_rows]
    if not divisors:
        divisors = [1]
    two_step = [d for d in divisors if batch // d >= 2]
    return max(two_step) if two_step else max(divisors)


def fusion_layer(x, w, *, tb=None):
    """x: (B, I, E) f32 ; w: (1, I, 1) f32 (the nn.Parameter).  Returns (B, E)."""
    batch, interactions, emb = x.shape
    assert w.shape == (1, interactions, 1)

    itemsize = jnp.dtype(x.dtype).itemsize
    if tb is None:
        tb = _pick_tb(batch, interactions, emb, itemsize)
    assert batch % tb == 0, "batch must be divisible by the batch tile"
    grid = (batch // tb,)

    # Pre-broadcast the weight to a lane-dense (1, I, E) block; its constant
    # index_map keeps it VMEM-resident for the whole grid.
    w_b = jnp.broadcast_to(w, (1, interactions, emb)).astype(x.dtype)

    # Explicit scoped-VMEM budget from the actual footprint (+ headroom),
    # capped so it is valid on every generation (v7x: 64 MiB physical/TC).
    x_block = tb * interactions * emb * itemsize
    o_block = tb * emb * 4
    w_block = interactions * emb * itemsize
    needed = 2 * x_block + 2 * o_block + w_block + (4 << 20)
    vmem_limit = int(min(max(needed, 32 << 20), _VMEM_LIMIT_CAP))

    return pl.pallas_call(
        fusion_kernel,
        out_shape=jax.ShapeDtypeStruct((batch, emb), jnp.float32),
        grid=grid,
        in_specs=[
            # Weight: same block every step -> stays resident in VMEM.
            pl.BlockSpec((1, interactions, emb), lambda b: (0, 0, 0)),
            # x: sliced along the batch axis per grid step (double-buffered).
            pl.BlockSpec((tb, interactions, emb), lambda b: (b, 0, 0)),
        ],
        out_specs=pl.BlockSpec((tb, emb), lambda b: (b, 0)),
        compiler_params=pltpu.CompilerParams(
            dimension_semantics=("parallel",),   # shards grid across TCs on v7x
            vmem_limit_bytes=vmem_limit,
        ),
    )(w_b, x)


def reference(x, w):
    # Exactly the PyTorch forward with use_bn=False: z = sum(x * W, dim=1)
    return jnp.sum(x * w, axis=1)


if __name__ == "__main__":
    key = jax.random.PRNGKey(0)
    k_x, k_w = jax.random.split(key)

    # Parameter W: xavier_uniform on a (1, I, 1) tensor (fan_in=I, fan_out=1).
    bound = math.sqrt(6.0 / (INTERACTION_NUM + 1))
    w = jax.random.uniform(k_w, (1, INTERACTION_NUM, 1), jnp.float32,
                           minval=-bound, maxval=bound)

    # Input activations.
    x = jax.random.normal(k_x, (B, INTERACTION_NUM, E), jnp.float32)

    out = fusion_layer(x, w)
    out = jax.block_until_ready(out)

    ref = reference(x, w)
    assert out.shape == (B, E), out.shape
    assert jnp.allclose(out, ref, atol=1e-5, rtol=1e-5), "mismatch vs reference"

    print("KERNEL_OK")
</pallas_src>

<mosaic_0001>
module attributes {stable_mosaic.version = 11 : i64} {
  func.func @fusion_kernel(%arg0: i32, %arg1: memref<1x120x128xf32, #tpu.memory_space<vmem>>, %arg2: memref<16x120x128xf32, #tpu.memory_space<vmem>>, %arg3: memref<16x128xf32, #tpu.memory_space<vmem>>) attributes {dimension_semantics = [#tpu.dimension_semantics<parallel>], iteration_bounds = array<i64: 2>, scalar_prefetch = 0 : i64, scratch_operands = 0 : i64, tpu.core_type = #tpu.core_type<tc>, window_params = [{pipeline_mode = #tpu.pipeline_mode<synchronous>, transform_indices = @transform_0, window_bounds = array<i64: 1, 120, 128>}, {transform_indices = @transform_1, window_bounds = array<i64: 16, 120, 128>}, {transform_indices = @transform_2, window_bounds = array<i64: 16, 128>}]} {
    %c0 = arith.constant 0 : index
    %c0_0 = arith.constant 0 : index
    %c0_1 = arith.constant 0 : index
    %0 = vector.load %arg2[%c0, %c0_0, %c0_1] : memref<16x120x128xf32, #tpu.memory_space<vmem>>, vector<16x120x128xf32>
    %c0_2 = arith.constant 0 : index
    %c0_3 = arith.constant 0 : index
    %c0_4 = arith.constant 0 : index
    %1 = vector.load %arg1[%c0_2, %c0_3, %c0_4] : memref<1x120x128xf32, #tpu.memory_space<vmem>>, vector<1x120x128xf32>
    %2 = vector.broadcast %1 : vector<1x120x128xf32> to vector<16x120x128xf32>
    %3 = arith.mulf %0, %2 : vector<16x120x128xf32>
    %cst = arith.constant dense<0.000000e+00> : vector<16x128xf32>
    %4 = vector.multi_reduction <add>, %3, %cst [1] : vector<16x120x128xf32> to vector<16x128xf32>
    %c0_5 = arith.constant 0 : index
    %c0_6 = arith.constant 0 : index
    %5 = vector.load %arg3[%c0_5, %c0_6] : memref<16x128xf32, #tpu.memory_space<vmem>>, vector<16x128xf32>
    tpu.vector_store %arg3[%c0_5, %c0_6], %4 {strides = array<i32>} : memref<16x128xf32, #tpu.memory_space<vmem>>, vector<16x128xf32>,
    return
  }
  func.func @transform_0(%arg0: i32) -> (i32, i32, i32) {
    %c0_i32 = arith.constant 0 : i32
    %c0_i32_0 = arith.constant 0 : i32
    %c0_i32_1 = arith.constant 0 : i32
    %c0_i32_2 = arith.constant 0 : i32
    return %c0_i32, %c0_i32_0, %c0_i32_1 : i32, i32, i32
  }
  func.func @transform_1(%arg0: i32) -> (i32, i32, i32) {
    %c0_i32 = arith.constant 0 : i32
    %c0_i32_0 = arith.constant 0 : i32
    %c0_i32_1 = arith.constant 0 : i32
    return %arg0, %c0_i32, %c0_i32_0 : i32, i32, i32
  }
  func.func @transform_2(%arg0: i32) -> (i32, i32) {
    %c0_i32 = arith.constant 0 : i32
    %c0_i32_0 = arith.constant 0 : i32
    return %arg0, %c0_i32 : i32, i32
  }
}

</mosaic_0001>

<llo_original>
// kernel: tpu_custom_call.1
$region0: #{tpu_custom_call.1}
  #allocation0 [shape = 'u32[]', space=smem, size = 0x4, offset = 0x4, fixed_abs, tag = 'smem constant byte address 0x4 - core index']
  #allocation1 [shape = 'u32[72,128]{1,0:T(1,128)}', space=vmem, size = 0x9000, scoped, tag = 'internal scratch']
  %s0 = inlined_call_operand.hbm [shape: f32[1,120,128], index: 0, kind: input, shape index: {}]
  %s1 = inlined_call_operand.hbm [shape: f32[32,120,128], index: 1, kind: input, shape index: {}]
  %s2 = inlined_call_operand.hbm [shape: f32[32,128], index: 2, kind: output, shape index: {}]
  %s3 = sld [smem:[#allocation0]]
  $region49: #{tpu_custom_call.1} parent=0
    _
  %s5 = ssub.s32 1, %s3
  %s6 = scalar_select 0, %s5, %s3
  $region1: #{tpu_custom_call.1} parent=0
    #allocation2 [shape = 'u8[61440]{0}', space=vmem, size = 0xf000, scoped, tag = 'input window, operand 0, single buffered']
    #allocation3 [shape = 's32[2]{0}', space=sflag, size = 0x8, scoped, tag = 'scoped memory for tpu_custom_call.1']
    #allocation4 [shape = 's32[2]{0}', space=sflag, size = 0x8, scoped, tag = 'scoped memory for tpu_custom_call.1']
    #allocation5 [shape = 'u8[1966080]{0}', space=vmem, size = 0x1e0000, scoped, tag = 'input window, operand 1']
    #allocation6 [shape = 's32[2]{0}', space=sflag, size = 0x8, scoped, tag = 'scoped memory for tpu_custom_call.1']
    #allocation7 [shape = 'u8[16384]{0}', space=vmem, size = 0x4000, scoped, tag = 'output window, operand 0']
    %7 = vsyncpa [#allocation3], 0
    %8 = vsyncpa [#allocation6], 0
    %s9 = scalar_lea.sflag [#allocation6], 1
    %10 = vsyncpa %s9, 0
    %11 = vsyncpa [#allocation4], 0
    %s12 = scalar_lea.sflag [#allocation4], 1
    %13 = vsyncpa %s12, 0
    loop: start=0, step=1, limit=4
    $region2: #{tpu_custom_call.1} parent=1 // loop_pre_header
      _
    $region3: #{tpu_custom_call.1} parent=1 // loop_header
      %s15 = sphi 0, %s19
      %p16 = scmp.ge.s32.totalorder %s15, 4
      %s23 = sphi 0, %s23
      %s25 = sphi 0, %s23
      %s26 = sphi 0, %s25
      %s40 = sphi 0, %s26
      %s46 = sphi 0, %s48
      %s49 = sphi 0, %s46
      %s50 = sphi 0, %s49
      %s66 = sphi 0, %s50
      %s72 = sphi 0, %s74
      %s75 = sphi 0, %s72
      %s76 = sphi 0, %s75
      %s92 = sphi 0, %s76
    $region4: #{tpu_custom_call.1} parent=1 // loop_header_branch
      %18 = sbr.rel (%p16) target = $region8
    $region5: #{tpu_custom_call.1} parent=1 // loop_body
      %s20 = ssub.s32 %s15, 1
      %s21 = ssub.s32 %s15, 2
      %s22 = sadd.s32 %s15, 1
      %s24 = sadd.s32 %s23, 1
      %p27 = scmp.eq.s32.totalorder %s15, 1
      %p28 = scmp.ne.s32.totalorder %s23, %s25
      %p29 = scmp.eq.s32.totalorder %s15, 0
      %p30 = por %p28, %p29
      %p31 = scmp.ne.s32.totalorder %s23, %s25
      %p32 = scmp.eq.s32.totalorder %s20, 1
      %p33 = por %p31, %p32
      %p34 = scmp.ne.s32.totalorder %s25, %s26
      %p35 = scmp.eq.s32.totalorder %s20, 0
      %p36 = por %p34, %p35
      %p37 = scmp.ne.s32.totalorder %s25, %s26
      %p38 = scmp.eq.s32.totalorder %s21, 1
      %p39 = por %p37, %p38
      %p41 = scmp.ne.s32.totalorder %s26, %s40
      %p42 = scmp.eq.s32.totalorder %s21, 0
      %p43 = por %p41, %p42
      %s44 = ssub.s32 %s15, %s22
      %p45 = scmp.eq.s32.totalorder %s44, 0
      %s47 = sadd.s32 %s46, 1
      %s48 = scalar_select %p45, %s46, %s47
      %p51 = pneg %p45
      %p52 = scmp.eq.s32.totalorder %s15, 1
      %p53 = por %p51, %p52
      %p54 = scmp.ne.s32.totalorder %s46, %s49
      %p55 = scmp.eq.s32.totalorder %s15, 0
      %p56 = por %p54, %p55
      %p57 = scmp.ne.s32.totalorder %s46, %s49
      %p58 = scmp.eq.s32.totalorder %s20, 1
      %p59 = por %p57, %p58
      %p60 = scmp.ne.s32.totalorder %s49, %s50
      %p61 = scmp.eq.s32.totalorder %s20, 0
      %p62 = por %p60, %p61
      %p63 = scmp.ne.s32.totalorder %s49, %s50
      %p64 = scmp.eq.s32.totalorder %s21, 1
      %p65 = por %p63, %p64
      %p67 = scmp.ne.s32.totalorder %s50, %s66
      %p68 = scmp.eq.s32.totalorder %s21, 0
      %p69 = por %p67, %p68
      %s70 = ssub.s32 %s15, %s22
      %p71 = scmp.eq.s32.totalorder %s70, 0
      %s73 = sadd.s32 %s72, 1
      %s74 = scalar_select %p71, %s72, %s73
      %p77 = pneg %p71
      %p78 = scmp.eq.s32.totalorder %s15, 1
      %p79 = por %p77, %p78
      %p80 = scmp.ne.s32.totalorder %s72, %s75
      %p81 = scmp.eq.s32.totalorder %s15, 0
      %p82 = por %p80, %p81
      %p83 = scmp.ne.s32.totalorder %s72, %s75
      %p84 = scmp.eq.s32.totalorder %s20, 1
      %p85 = por %p83, %p84
      %p86 = scmp.ne.s32.totalorder %s75, %s76
      %p87 = scmp.eq.s32.totalorder %s20, 0
      %p88 = por %p86, %p87
      %p89 = scmp.ne.s32.totalorder %s75, %s76
      %p90 = scmp.eq.s32.totalorder %s21, 1
      %p91 = por %p89, %p90
      %p93 = scmp.ne.s32.totalorder %s76, %s92
      %p94 = scmp.eq.s32.totalorder %s21, 0
      %p95 = por %p93, %p94
      %p96 = scmp.le.s32.totalorder 1, %s15
      %p97 = scmp.lt.s32.totalorder %s15, 3
      %p98 = pnand %p96, %p97
      %p99 = pneg %p98
      // Predicated region
      $region9: #{tpu_custom_call.1} parent=5 // pred_check
        _
      $region10: #{tpu_custom_call.1} parent=5 // pred_check_branch
        %101 = sbr.rel (%p98) target = $region12
      $region11: #{tpu_custom_call.1} parent=5 // pred_region
        %s102 = ssub.s32 %s15, 1
        // Predicated region
        $region13: #{tpu_custom_call.1} parent=11 // pred_check
          %p103 = pneg %p36
        $region14: #{tpu_custom_call.1} parent=11 // pred_check_branch
          %105 = sbr.rel (%p103) target = $region16
        $region15: #{tpu_custom_call.1} parent=11 // pred_region
          %107 = vsyncadd [#allocation3], 0
          %s108 = sshll.u32 %s0, 4
          %s109 = int_to_ptr.hbm [resolvable:$true] %s108
          %s110 = sshll.u32 [#allocation2], 4
          %s111 = int_to_ptr.vmem [resolvable:$true] %s110
          %116 = dma.hbm_to_vmem [thread:$0]  %s109, 1920, %s111, [#allocation3], 128, 128, 8
        $region16: #{tpu_custom_call.1} parent=11 // pred_fallthru
          _
      $region12: #{tpu_custom_call.1} parent=5 // pred_fallthru
        _
      %p117 = scmp.lt.s32.totalorder %s15, 2
      // Predicated region
      $region17: #{tpu_custom_call.1} parent=5 // pred_check
        %p118 = pneg %p117
      $region18: #{tpu_custom_call.1} parent=5 // pred_check_branch
        %120 = sbr.rel (%p118) target = $region20
      $region19: #{tpu_custom_call.1} parent=5 // pred_region
        // Predicated region
        $region21: #{tpu_custom_call.1} parent=19 // pred_check
          %p121 = pneg %p56
        $region22: #{tpu_custom_call.1} parent=19 // pred_check_branch
          %123 = sbr.rel (%p121) target = $region24
        $region23: #{tpu_custom_call.1} parent=19 // pred_region
          %s124 = sand.u32 %s46, 1
          %s125 = scalar_lea.sflag [#allocation6], %s124
          %s126 = sand.u32 %s46, 1
          %s127 = smul.addr %s126, 1920
          %s128 = scalar_lea.vmem [#allocation5], %s127
          %s129 = smul.u32 16, %s15
          %131 = vsyncadd %s125, 0
          %s132 = smul.addr %s129, 15
          %s133 = smul.addr %s132, 8
          %s134 = scalar_lea.hbm %s1, %s133
          %s135 = sshll.u32 %s134, 4
          %s136 = int_to_ptr.hbm [resolvable:$true] %s135
          %s137 = sshll.u32 %s128, 4
          %s138 = int_to_ptr.vmem [resolvable:$true] %s137
          %143 = dma.hbm_to_vmem [thread:$0]  %s136, 30720, %s138, %s125, 128, 128, 8
        $region24: #{tpu_custom_call.1} parent=19 // pred_fallthru
          _
      $region20: #{tpu_custom_call.1} parent=5 // pred_fallthru
        _
      %p144 = scmp.le.s32.totalorder 1, %s15
      %p145 = scmp.lt.s32.totalorder %s15, 3
      %p146 = pnand %p144, %p145
      %p147 = pneg %p146
      // Predicated region
      $region25: #{tpu_custom_call.1} parent=5 // pred_check
        _
      $region26: #{tpu_custom_call.1} parent=5 // pred_check_branch
        %149 = sbr.rel (%p146) target = $region28
      $region27: #{tpu_custom_call.1} parent=5 // pred_region
        %s150 = ssub.s32 %s15, 1
        // Predicated region
        $region29: #{tpu_custom_call.1} parent=27 // pred_check
          %p151 = pneg %p36
        $region30: #{tpu_custom_call.1} parent=27 // pred_check_branch
          %153 = sbr.rel (%p151) target = $region32
        $region31: #{tpu_custom_call.1} parent=27 // pred_region
          %155 = dma.done [#allocation3], 1920
        $region32: #{tpu_custom_call.1} parent=27 // pred_fallthru
          _
        %s156 = sand.u32 %s49, 1
        %s157 = scalar_lea.sflag [#allocation6], %s156
        %s158 = sand.u32 %s49, 1
        %s159 = smul.addr %s158, 1920
        %s160 = scalar_lea.vmem [#allocation5], %s159
        // Predicated region
        $region33: #{tpu_custom_call.1} parent=27 // pred_check
          %p161 = pneg %p62
        $region34: #{tpu_custom_call.1} parent=27 // pred_check_branch
          %163 = sbr.rel (%p161) target = $region36
        $region35: #{tpu_custom_call.1} parent=27 // pred_region
          %165 = dma.done %s157, 30720
        $region36: #{tpu_custom_call.1} parent=27 // pred_fallthru
          _
        %p166 = pneg %p36
        %p167 = pneg %p33
        %s168 = sand.u32 %s49, 1
        %s169 = scalar_lea.sflag [#allocation6], %s168
        %s170 = sand.u32 %s49, 1
        %s171 = smul.addr %s170, 1920
        %s172 = scalar_lea.vmem [#allocation5], %s171
        %p173 = pneg %p62
        %p174 = pneg %p59
        %p175 = pneg %p88
        %p176 = pneg %p85
        %s177 = sand.u32 %s75, 1
        %s178 = scalar_lea.sflag [#allocation4], %s177
        %s179 = sand.u32 %s75, 1
        %s180 = smul.addr %s179, 16
        %s181 = scalar_lea.vmem [#allocation7], %s180
        %s182 = smul.u32 16, %s20
        %s183 = smul.u32 2, %s20
        %v184 = vld [vmem:[%s160] sm:$0xff]
        %v185 = vld [vmem:[%s160 + $0x8] sm:$0xff]
        %v186 = vld [vmem:[%s160 + $0x10] sm:$0xff]
        %v187 = vld [vmem:[%s160 + $0x18] sm:$0xff]
        %v188 = vld [vmem:[%s160 + $0x20] sm:$0xff]
        %v189 = vld [vmem:[%s160 + $0x28] sm:$0xff]
        %v190 = vld [vmem:[%s160 + $0x30] sm:$0xff]
        %v191 = vld [vmem:[%s160 + $0x38] sm:$0xff]
        %v192 = vld [vmem:[%s160 + $0x40] sm:$0xff]
        %v193 = vld [vmem:[%s160 + $0x48] sm:$0xff]
        %v194 = vld [vmem:[%s160 + $0x50] sm:$0xff]
        %v195 = vld [vmem:[%s160 + $0x58] sm:$0xff]
        %v196 = vld [vmem:[%s160 + $0x60] sm:$0xff]
        %v197 = vld [vmem:[%s160 + $0x68] sm:$0xff]
        %v198 = vld [vmem:[%s160 + $0x70] sm:$0xff]
        %v199 = vld [vmem:[%s160 + $0x78] sm:$0xff]
        %v200 = vld [vmem:[%s160 + $0x80] sm:$0xff]
        %v201 = vld [vmem:[%s160 + $0x88] sm:$0xff]
        %v202 = vld [vmem:[%s160 + $0x90] sm:$0xff]
        %v203 = vld [vmem:[%s160 + $0x98] sm:$0xff]
        %v204 = vld [vmem:[%s160 + $0xa0] sm:$0xff]
        %v205 = vld [vmem:[%s160 + $0xa8] sm:$0xff]
        %v206 = vld [vmem:[%s160 + $0xb0] sm:$0xff]
        %v207 = vld [vmem:[%s160 + $0xb8] sm:$0xff]
        %v208 = vld [vmem:[%s160 + $0xc0] sm:$0xff]
        %v209 = vld [vmem:[%s160 + $0xc8] sm:$0xff]
        %v210 = vld [vmem:[%s160 + $0xd0] sm:$0xff]
        %v211 = vld [vmem:[%s160 + $0xd8] sm:$0xff]
        %v212 = vld [vmem:[%s160 + $0xe0] sm:$0xff]
        %v213 = vld [vmem:[%s160 + $0xe8] sm:$0xff]
        %v214 = vld [vmem:[%s160 + $0xf0] sm:$0xff]
        %v215 = vld [vmem:[%s160 + $0xf8] sm:$0xff]
        %v216 = vld [vmem:[%s160 + $0x100] sm:$0xff]
        %v217 = vld [vmem:[%s160 + $0x108] sm:$0xff]
        %v218 = vld [vmem:[%s160 + $0x110] sm:$0xff]
        %v219 = vld [vmem:[%s160 + $0x118] sm:$0xff]
        %v220 = vld [vmem:[%s160 + $0x120] sm:$0xff]
        %v221 = vld [vmem:[%s160 + $0x128] sm:$0xff]
        %v222 = vld [vmem:[%s160 + $0x130] sm:$0xff]
        %v223 = vld [vmem:[%s160 + $0x138] sm:$0xff]
        %v224 = vld [vmem:[%s160 + $0x140] sm:$0xff]
        %v225 = vld [vmem:[%s160 + $0x148] sm:$0xff]
        %v226 = vld [vmem:[%s160 + $0x150] sm:$0xff]
        %v227 = vld [vmem:[%s160 + $0x158] sm:$0xff]
        %v228 = vld [vmem:[%s160 + $0x160] sm:$0xff]
        %v229 = vld [vmem:[%s160 + $0x168] sm:$0xff]
        %v230 = vld [vmem:[%s160 + $0x170] sm:$0xff]
        %v231 = vld [vmem:[%s160 + $0x178] sm:$0xff]
        %v232 = vld [vmem:[%s160 + $0x180] sm:$0xff]
        %v233 = vld [vmem:[%s160 + $0x188] sm:$0xff]
        %v234 = vld [vmem:[%s160 + $0x190] sm:$0xff]
        %v235 = vld [vmem:[%s160 + $0x198] sm:$0xff]
        %v236 = vld [vmem:[%s160 + $0x1a0] sm:$0xff]
        %v237 = vld [vmem:[%s160 + $0x1a8] sm:$0xff]
        %v238 = vld [vmem:[%s160 + $0x1b0] sm:$0xff]
        %v239 = vld [vmem:[%s160 + $0x1b8] sm:$0xff]
        %v240 = vld [vmem:[%s160 + $0x1c0] sm:$0xff]
        %v241 = vld [vmem:[%s160 + $0x1c8] sm:$0xff]
        %v242 = vld [vmem:[%s160 + $0x1d0] sm:$0xff]
        %v243 = vld [vmem:[%s160 + $0x1d8] sm:$0xff]
        %v244 = vld [vmem:[%s160 + $0x1e0] sm:$0xff]
        %v245 = vld [vmem:[%s160 + $0x1e8] sm:$0xff]
        %v246 = vld [vmem:[%s160 + $0x1f0] sm:$0xff]
        %v247 = vld [vmem:[%s160 + $0x1f8] sm:$0xff]
        %v248 = vld [vmem:[%s160 + $0x200] sm:$0xff]
        %v249 = vld [vmem:[%s160 + $0x208] sm:$0xff]
        %v250 = vld [vmem:[%s160 + $0x210] sm:$0xff]
        %v251 = vld [vmem:[%s160 + $0x218] sm:$0xff]
        %v252 = vld [vmem:[%s160 + $0x220] sm:$0xff]
        %v253 = vld [vmem:[%s160 + $0x228] sm:$0xff]
        %v254 = vld [vmem:[%s160 + $0x230] sm:$0xff]
        %v255 = vld [vmem:[%s160 + $0x238] sm:$0xff]
        %v256 = vld [vmem:[%s160 + $0x240] sm:$0xff]
        %v257 = vld [vmem:[%s160 + $0x248] sm:$0xff]
        %v258 = vld [vmem:[%s160 + $0x250] sm:$0xff]
        %v259 = vld [vmem:[%s160 + $0x258] sm:$0xff]
        %v260 = vld [vmem:[%s160 + $0x260] sm:$0xff]
        %v261 = vld [vmem:[%s160 + $0x268] sm:$0xff]
        %v262 = vld [vmem:[%s160 + $0x270] sm:$0xff]
        %v263 = vld [vmem:[%s160 + $0x278] sm:$0xff]
        %v264 = vld [vmem:[%s160 + $0x280] sm:$0xff]
        %v265 = vld [vmem:[%s160 + $0x288] sm:$0xff]
        %v266 = vld [vmem:[%s160 + $0x290] sm:$0xff]
        %v267 = vld [vmem:[%s160 + $0x298] sm:$0xff]
        %v268 = vld [vmem:[%s160 + $0x2a0] sm:$0xff]
        %v269 = vld [vmem:[%s160 + $0x2a8] sm:$0xff]
        %v270 = vld [vmem:[%s160 + $0x2b0] sm:$0xff]
        %v271 = vld [vmem:[%s160 + $0x2b8] sm:$0xff]
        %v272 = vld [vmem:[%s160 + $0x2c0] sm:$0xff]
        %v273 = vld [vmem:[%s160 + $0x2c8] sm:$0xff]
        %v274 = vld [vmem:[%s160 + $0x2d0] sm:$0xff]
        %v275 = vld [vmem:[%s160 + $0x2d8] sm:$0xff]
        %v276 = vld [vmem:[%s160 + $0x2e0] sm:$0xff]
        %v277 = vld [vmem:[%s160 + $0x2e8] sm:$0xff]
        %v278 = vld [vmem:[%s160 + $0x2f0] sm:$0xff]
        %v279 = vld [vmem:[%s160 + $0x2f8] sm:$0xff]
        %v280 = vld [vmem:[%s160 + $0x300] sm:$0xff]
        %v281 = vld [vmem:[%s160 + $0x308] sm:$0xff]
        %v282 = vld [vmem:[%s160 + $0x310] sm:$0xff]
        %v283 = vld [vmem:[%s160 + $0x318] sm:$0xff]
        %v284 = vld [vmem:[%s160 + $0x320] sm:$0xff]
        %v285 = vld [vmem:[%s160 + $0x328] sm:$0xff]
        %v286 = vld [vmem:[%s160 + $0x330] sm:$0xff]
        %v287 = vld [vmem:[%s160 + $0x338] sm:$0xff]
        %v288 = vld [vmem:[%s160 + $0x340] sm:$0xff]
        %v289 = vld [vmem:[%s160 + $0x348] sm:$0xff]
        %v290 = vld [vmem:[%s160 + $0x350] sm:$0xff]
        %v291 = vld [vmem:[%s160 + $0x358] sm:$0xff]
        %v292 = vld [vmem:[%s160 + $0x360] sm:$0xff]
        %v293 = vld [vmem:[%s160 + $0x368] sm:$0xff]
        %v294 = vld [vmem:[%s160 + $0x370] sm:$0xff]
        %v295 = vld [vmem:[%s160 + $0x378] sm:$0xff]
        %v296 = vld [vmem:[%s160 + $0x380] sm:$0xff]
        %v297 = vld [vmem:[%s160 + $0x388] sm:$0xff]
        %v298 = vld [vmem:[%s160 + $0x390] sm:$0xff]
        %v299 = vld [vmem:[%s160 + $0x398] sm:$0xff]
        %v300 = vld [vmem:[%s160 + $0x3a0] sm:$0xff]
        %v301 = vld [vmem:[%s160 + $0x3a8] sm:$0xff]
        %v302 = vld [vmem:[%s160 + $0x3b0] sm:$0xff]
        %v303 = vld [vmem:[%s160 + $0x3b8] sm:$0xff]
        %v304 = vld [vmem:[%s160 + $0x3c0] sm:$0xff]
        %v305 = vld [vmem:[%s160 + $0x3c8] sm:$0xff]
        %v306 = vld [vmem:[%s160 + $0x3d0] sm:$0xff]
        %v307 = vld [vmem:[%s160 + $0x3d8] sm:$0xff]
        %v308 = vld [vmem:[%s160 + $0x3e0] sm:$0xff]
        %v309 = vld [vmem:[%s160 + $0x3e8] sm:$0xff]
        %v310 = vld [vmem:[%s160 + $0x3f0] sm:$0xff]
        %v311 = vld [vmem:[%s160 + $0x3f8] sm:$0xff]
        %v312 = vld [vmem:[%s160 + $0x400] sm:$0xff]
        %v313 = vld [vmem:[%s160 + $0x408] sm:$0xff]
        %v314 = vld [vmem:[%s160 + $0x410] sm:$0xff]
        %v315 = vld [vmem:[%s160 + $0x418] sm:$0xff]
        %v316 = vld [vmem:[%s160 + $0x420] sm:$0xff]
        %v317 = vld [vmem:[%s160 + $0x428] sm:$0xff]
        %v318 = vld [vmem:[%s160 + $0x430] sm:$0xff]
        %v319 = vld [vmem:[%s160 + $0x438] sm:$0xff]
        %v320 = vld [vmem:[%s160 + $0x440] sm:$0xff]
        %v321 = vld [vmem:[%s160 + $0x448] sm:$0xff]
        %v322 = vld [vmem:[%s160 + $0x450] sm:$0xff]
        %v323 = vld [vmem:[%s160 + $0x458] sm:$0xff]
        %v324 = vld [vmem:[%s160 + $0x460] sm:$0xff]
        %v325 = vld [vmem:[%s160 + $0x468] sm:$0xff]
        %v326 = vld [vmem:[%s160 + $0x470] sm:$0xff]
        %v327 = vld [vmem:[%s160 + $0x478] sm:$0xff]
        %v328 = vld [vmem:[%s160 + $0x480] sm:$0xff]
        %v329 = vld [vmem:[%s160 + $0x488] sm:$0xff]
        %v330 = vld [vmem:[%s160 + $0x490] sm:$0xff]
        %v331 = vld [vmem:[%s160 + $0x498] sm:$0xff]
        %v332 = vld [vmem:[%s160 + $0x4a0] sm:$0xff]
        %v333 = vld [vmem:[%s160 + $0x4a8] sm:$0xff]
        %v334 = vld [vmem:[%s160 + $0x4b0] sm:$0xff]
        %v335 = vld [vmem:[%s160 + $0x4b8] sm:$0xff]
        %v336 = vld [vmem:[%s160 + $0x4c0] sm:$0xff]
        %v337 = vld [vmem:[%s160 + $0x4c8] sm:$0xff]
        %v338 = vld [vmem:[%s160 + $0x4d0] sm:$0xff]
        %v339 = vld [vmem:[%s160 + $0x4d8] sm:$0xff]
        %v340 = vld [vmem:[%s160 + $0x4e0] sm:$0xff]
        %v341 = vld [vmem:[%s160 + $0x4e8] sm:$0xff]
        %v342 = vld [vmem:[%s160 + $0x4f0] sm:$0xff]
        %v343 = vld [vmem:[%s160 + $0x4f8] sm:$0xff]
        %v344 = vld [vmem:[%s160 + $0x500] sm:$0xff]
        %v345 = vld [vmem:[%s160 + $0x508] sm:$0xff]
        %v346 = vld [vmem:[%s160 + $0x510] sm:$0xff]
        %v347 = vld [vmem:[%s160 + $0x518] sm:$0xff]
        %v348 = vld [vmem:[%s160 + $0x520] sm:$0xff]
        %v349 = vld [vmem:[%s160 + $0x528] sm:$0xff]
        %v350 = vld [vmem:[%s160 + $0x530] sm:$0xff]
        %v351 = vld [vmem:[%s160 + $0x538] sm:$0xff]
        %v352 = vld [vmem:[%s160 + $0x540] sm:$0xff]
        %v353 = vld [vmem:[%s160 + $0x548] sm:$0xff]
        %v354 = vld [vmem:[%s160 + $0x550] sm:$0xff]
        %v355 = vld [vmem:[%s160 + $0x558] sm:$0xff]
        %v356 = vld [vmem:[%s160 + $0x560] sm:$0xff]
        %v357 = vld [vmem:[%s160 + $0x568] sm:$0xff]
        %v358 = vld [vmem:[%s160 + $0x570] sm:$0xff]
        %v359 = vld [vmem:[%s160 + $0x578] sm:$0xff]
        %v360 = vld [vmem:[%s160 + $0x580] sm:$0xff]
        %v361 = vld [vmem:[%s160 + $0x588] sm:$0xff]
        %v362 = vld [vmem:[%s160 + $0x590] sm:$0xff]
        %v363 = vld [vmem:[%s160 + $0x598] sm:$0xff]
        %v364 = vld [vmem:[%s160 + $0x5a0] sm:$0xff]
        %v365 = vld [vmem:[%s160 + $0x5a8] sm:$0xff]
        %v366 = vld [vmem:[%s160 + $0x5b0] sm:$0xff]
        %v367 = vld [vmem:[%s160 + $0x5b8] sm:$0xff]
        %v368 = vld [vmem:[%s160 + $0x5c0] sm:$0xff]
        %v369 = vld [vmem:[%s160 + $0x5c8] sm:$0xff]
        %v370 = vld [vmem:[%s160 + $0x5d0] sm:$0xff]
        %v371 = vld [vmem:[%s160 + $0x5d8] sm:$0xff]
        %v372 = vld [vmem:[%s160 + $0x5e0] sm:$0xff]
        %v373 = vld [vmem:[%s160 + $0x5e8] sm:$0xff]
        %v374 = vld [vmem:[%s160 + $0x5f0] sm:$0xff]
        %v375 = vld [vmem:[%s160 + $0x5f8] sm:$0xff]
        %v376 = vld [vmem:[%s160 + $0x600] sm:$0xff]
        %v377 = vld [vmem:[%s160 + $0x608] sm:$0xff]
        %v378 = vld [vmem:[%s160 + $0x610] sm:$0xff]
        %v379 = vld [vmem:[%s160 + $0x618] sm:$0xff]
        %v380 = vld [vmem:[%s160 + $0x620] sm:$0xff]
        %v381 = vld [vmem:[%s160 + $0x628] sm:$0xff]
        %v382 = vld [vmem:[%s160 + $0x630] sm:$0xff]
        %v383 = vld [vmem:[%s160 + $0x638] sm:$0xff]
        %v384 = vld [vmem:[%s160 + $0x640] sm:$0xff]
        %v385 = vld [vmem:[%s160 + $0x648] sm:$0xff]
        %v386 = vld [vmem:[%s160 + $0x650] sm:$0xff]
        %v387 = vld [vmem:[%s160 + $0x658] sm:$0xff]
        %v388 = vld [vmem:[%s160 + $0x660] sm:$0xff]
        %v389 = vld [vmem:[%s160 + $0x668] sm:$0xff]
        %v390 = vld [vmem:[%s160 + $0x670] sm:$0xff]
        %v391 = vld [vmem:[%s160 + $0x678] sm:$0xff]
        %v392 = vld [vmem:[%s160 + $0x680] sm:$0xff]
        %v393 = vld [vmem:[%s160 + $0x688] sm:$0xff]
        %v394 = vld [vmem:[%s160 + $0x690] sm:$0xff]
        %v395 = vld [vmem:[%s160 + $0x698] sm:$0xff]
        %v396 = vld [vmem:[%s160 + $0x6a0] sm:$0xff]
        %v397 = vld [vmem:[%s160 + $0x6a8] sm:$0xff]
        %v398 = vld [vmem:[%s160 + $0x6b0] sm:$0xff]
        %v399 = vld [vmem:[%s160 + $0x6b8] sm:$0xff]
        %v400 = vld [vmem:[%s160 + $0x6c0] sm:$0xff]
        %v401 = vld [vmem:[%s160 + $0x6c8] sm:$0xff]
        %v402 = vld [vmem:[%s160 + $0x6d0] sm:$0xff]
        %v403 = vld [vmem:[%s160 + $0x6d8] sm:$0xff]
        %v404 = vld [vmem:[%s160 + $0x6e0] sm:$0xff]
        %v405 = vld [vmem:[%s160 + $0x6e8] sm:$0xff]
        %v406 = vld [vmem:[%s160 + $0x6f0] sm:$0xff]
        %v407 = vld [vmem:[%s160 + $0x6f8] sm:$0xff]
        %v408 = vld [vmem:[%s160 + $0x700] sm:$0xff]
        %v409 = vld [vmem:[%s160 + $0x708] sm:$0xff]
        %v410 = vld [vmem:[%s160 + $0x710] sm:$0xff]
        %v411 = vld [vmem:[%s160 + $0x718] sm:$0xff]
        %v412 = vld [vmem:[%s160 + $0x720] sm:$0xff]
        %v413 = vld [vmem:[%s160 + $0x728] sm:$0xff]
        %v414 = vld [vmem:[%s160 + $0x730] sm:$0xff]
        %v415 = vld [vmem:[%s160 + $0x738] sm:$0xff]
        %v416 = vld [vmem:[%s160 + $0x740] sm:$0xff]
        %v417 = vld [vmem:[%s160 + $0x748] sm:$0xff]
        %v418 = vld [vmem:[%s160 + $0x750] sm:$0xff]
        %v419 = vld [vmem:[%s160 + $0x758] sm:$0xff]
        %v420 = vld [vmem:[%s160 + $0x760] sm:$0xff]
        %v421 = vld [vmem:[%s160 + $0x768] sm:$0xff]
        %v422 = vld [vmem:[%s160 + $0x770] sm:$0xff]
        %v423 = vld [vmem:[%s160 + $0x778] sm:$0xff]
        %v424 = vld [vmem:[#allocation2] sm:$0xff]
        %v425 = vld [vmem:[#allocation2 + $0x8] sm:$0xff]
        %v426 = vld [vmem:[#allocation2 + $0x10] sm:$0xff]
        %v427 = vld [vmem:[#allocation2 + $0x18] sm:$0xff]
        %v428 = vld [vmem:[#allocation2 + $0x20] sm:$0xff]
        %v429 = vld [vmem:[#allocation2 + $0x28] sm:$0xff]
        %v430 = vld [vmem:[#allocation2 + $0x30] sm:$0xff]
        %v431 = vld [vmem:[#allocation2 + $0x38] sm:$0xff]
        %v432 = vld [vmem:[#allocation2 + $0x40] sm:$0xff]
        %v433 = vld [vmem:[#allocation2 + $0x48] sm:$0xff]
        %v434 = vld [vmem:[#allocation2 + $0x50] sm:$0xff]
        %v435 = vld [vmem:[#allocation2 + $0x58] sm:$0xff]
        %v436 = vld [vmem:[#allocation2 + $0x60] sm:$0xff]
        %v437 = vld [vmem:[#allocation2 + $0x68] sm:$0xff]
        %v438 = vld [vmem:[#allocation2 + $0x70] sm:$0xff]
        %v439 = vmul.f32 %v184, %v424
        %v440 = vmul.f32 %v185, %v425
        %v441 = vmul.f32 %v186, %v426
        %v442 = vmul.f32 %v187, %v427
        %v443 = vmul.f32 %v188, %v428
        %v444 = vmul.f32 %v189, %v429
        %v445 = vmul.f32 %v190, %v430
        %v446 = vmul.f32 %v191, %v431
        %v447 = vmul.f32 %v192, %v432
        %v448 = vmul.f32 %v193, %v433
        %v449 = vmul.f32 %v194, %v434
        %v450 = vmul.f32 %v195, %v435
        %v451 = vmul.f32 %v196, %v436
        %v452 = vmul.f32 %v197, %v437
        %v453 = vmul.f32 %v198, %v438
        %v454 = vmul.f32 %v199, %v424
        %v455 = vmul.f32 %v200, %v425
        %v456 = vmul.f32 %v201, %v426
        %v457 = vmul.f32 %v202, %v427
        %v458 = vmul.f32 %v203, %v428
        %v459 = vmul.f32 %v204, %v429
        %v460 = vmul.f32 %v205, %v430
        %v461 = vmul.f32 %v206, %v431
        %v462 = vmul.f32 %v207, %v432
        %v463 = vmul.f32 %v208, %v433
        %v464 = vmul.f32 %v209, %v434
        %v465 = vmul.f32 %v210, %v435
        %v466 = vmul.f32 %v211, %v436
        %v467 = vmul.f32 %v212, %v437
        %v468 = vmul.f32 %v213, %v438
        %v469 = vmul.f32 %v214, %v424
        %v470 = vmul.f32 %v215, %v425
        %v471 = vmul.f32 %v216, %v426
        %v472 = vmul.f32 %v217, %v427
        %v473 = vmul.f32 %v218, %v428
        %v474 = vmul.f32 %v219, %v429
        %v475 = vmul.f32 %v220, %v430
        %v476 = vmul.f32 %v221, %v431
        %v477 = vmul.f32 %v222, %v432
        %v478 = vmul.f32 %v223, %v433
        %v479 = vmul.f32 %v224, %v434
        %v480 = vmul.f32 %v225, %v435
        %v481 = vmul.f32 %v226, %v436
        %v482 = vmul.f32 %v227, %v437
        %v483 = vmul.f32 %v228, %v438
        %v484 = vmul.f32 %v229, %v424
        %v485 = vmul.f32 %v230, %v425
        %v486 = vmul.f32 %v231, %v426
        %v487 = vmul.f32 %v232, %v427
        %v488 = vmul.f32 %v233, %v428
        %v489 = vmul.f32 %v234, %v429
        %v490 = vmul.f32 %v235, %v430
        %v491 = vmul.f32 %v236, %v431
        %v492 = vmul.f32 %v237, %v432
        %v493 = vmul.f32 %v238, %v433
        %v494 = vmul.f32 %v239, %v434
        %v495 = vmul.f32 %v240, %v435
        %v496 = vmul.f32 %v241, %v436
        %v497 = vmul.f32 %v242, %v437
        %v498 = vmul.f32 %v243, %v438
        %v499 = vmul.f32 %v244, %v424
        %v500 = vmul.f32 %v245, %v425
        %v501 = vmul.f32 %v246, %v426
        %v502 = vmul.f32 %v247, %v427
        %v503 = vmul.f32 %v248, %v428
        %v504 = vmul.f32 %v249, %v429
        %v505 = vmul.f32 %v250, %v430
        %v506 = vmul.f32 %v251, %v431
        %v507 = vmul.f32 %v252, %v432
        %v508 = vmul.f32 %v253, %v433
        %v509 = vmul.f32 %v254, %v434
        %v510 = vmul.f32 %v255, %v435
        %v511 = vmul.f32 %v256, %v436
        %v512 = vmul.f32 %v257, %v437
        %v513 = vmul.f32 %v258, %v438
        %v514 = vmul.f32 %v259, %v424
        %v515 = vmul.f32 %v260, %v425
        %v516 = vmul.f32 %v261, %v426
        %v517 = vmul.f32 %v262, %v427
        %v518 = vmul.f32 %v263, %v428
        %v519 = vmul.f32 %v264, %v429
        %v520 = vmul.f32 %v265, %v430
        %v521 = vmul.f32 %v266, %v431
        %v522 = vmul.f32 %v267, %v432
        %v523 = vmul.f32 %v268, %v433
        %v524 = vmul.f32 %v269, %v434
        %v525 = vmul.f32 %v270, %v435
        %v526 = vmul.f32 %v271, %v436
        %v527 = vmul.f32 %v272, %v437
        %v528 = vmul.f32 %v273, %v438
        %v529 = vmul.f32 %v274, %v424
        %v530 = vmul.f32 %v275, %v425
        %v531 = vmul.f32 %v276, %v426
        %v532 = vmul.f32 %v277, %v427
        %v533 = vmul.f32 %v278, %v428
        %v534 = vmul.f32 %v279, %v429
        %v535 = vmul.f32 %v280, %v430
        %v536 = vmul.f32 %v281, %v431
        %v537 = vmul.f32 %v282, %v432
        %v538 = vmul.f32 %v283, %v433
        %v539 = vmul.f32 %v284, %v434
        %v540 = vmul.f32 %v285, %v435
        %v541 = vmul.f32 %v286, %v436
        %v542 = vmul.f32 %v287, %v437
        %v543 = vmul.f32 %v288, %v438
        %v544 = vmul.f32 %v289, %v424
        %v545 = vmul.f32 %v290, %v425
        %v546 = vmul.f32 %v291, %v426
        %v547 = vmul.f32 %v292, %v427
        %v548 = vmul.f32 %v293, %v428
        %v549 = vmul.f32 %v294, %v429
        %v550 = vmul.f32 %v295, %v430
        %v551 = vmul.f32 %v296, %v431
        %v552 = vmul.f32 %v297, %v432
        %v553 = vmul.f32 %v298, %v433
        %v554 = vmul.f32 %v299, %v434
        %v555 = vmul.f32 %v300, %v435
        %v556 = vmul.f32 %v301, %v436
        %v557 = vmul.f32 %v302, %v437
        %v558 = vmul.f32 %v303, %v438
        %v559 = vmul.f32 %v304, %v424
        %v560 = vmul.f32 %v305, %v425
        %v561 = vmul.f32 %v306, %v426
        %v562 = vmul.f32 %v307, %v427
        %v563 = vmul.f32 %v308, %v428
        %v564 = vmul.f32 %v309, %v429
        %v565 = vmul.f32 %v310, %v430
        %v566 = vmul.f32 %v311, %v431
        %v567 = vmul.f32 %v312, %v432
        %v568 = vmul.f32 %v313, %v433
        %v569 = vmul.f32 %v314, %v434
        %v570 = vmul.f32 %v315, %v435
        %v571 = vmul.f32 %v316, %v436
        %v572 = vmul.f32 %v317, %v437
        %v573 = vmul.f32 %v318, %v438
        %v574 = vmul.f32 %v319, %v424
        %v575 = vmul.f32 %v320, %v425
        %v576 = vmul.f32 %v321, %v426
        %v577 = vmul.f32 %v322, %v427
        %v578 = vmul.f32 %v323, %v428
        %v579 = vmul.f32 %v324, %v429
        %v580 = vmul.f32 %v325, %v430
        %v581 = vmul.f32 %v326, %v431
        %v582 = vmul.f32 %v327, %v432
        %v583 = vmul.f32 %v328, %v433
        %v584 = vmul.f32 %v329, %v434
        %v585 = vmul.f32 %v330, %v435
        %v586 = vmul.f32 %v331, %v436
        %v587 = vmul.f32 %v332, %v437
        %v588 = vmul.f32 %v333, %v438
        %v589 = vmul.f32 %v334, %v424
        %v590 = vmul.f32 %v335, %v425
        %v591 = vmul.f32 %v336, %v426
        %v592 = vmul.f32 %v337, %v427
        %v593 = vmul.f32 %v338, %v428
        %v594 = vmul.f32 %v339, %v429
        %v595 = vmul.f32 %v340, %v430
        %v596 = vmul.f32 %v341, %v431
        %v597 = vmul.f32 %v342, %v432
        %v598 = vmul.f32 %v343, %v433
        %v599 = vmul.f32 %v344, %v434
        %v600 = vmul.f32 %v345, %v435
        %v601 = vmul.f32 %v346, %v436
        %v602 = vmul.f32 %v347, %v437
        %v603 = vmul.f32 %v348, %v438
        %v604 = vmul.f32 %v349, %v424
        %v605 = vmul.f32 %v350, %v425
        %v606 = vmul.f32 %v351, %v426
        %v607 = vmul.f32 %v352, %v427
        %v608 = vmul.f32 %v353, %v428
        %v609 = vmul.f32 %v354, %v429
        %v610 = vmul.f32 %v355, %v430
        %v611 = vmul.f32 %v356, %v431
        %v612 = vmul.f32 %v357, %v432
        %v613 = vmul.f32 %v358, %v433
        %v614 = vmul.f32 %v359, %v434
        %v615 = vmul.f32 %v360, %v435
        %v616 = vmul.f32 %v361, %v436
        %v617 = vmul.f32 %v362, %v437
        %v618 = vmul.f32 %v363, %v438
        %v619 = vmul.f32 %v364, %v424
        %v620 = vmul.f32 %v365, %v425
        %v621 = vmul.f32 %v366, %v426
        %v622 = vmul.f32 %v367, %v427
        %v623 = vmul.f32 %v368, %v428
        %v624 = vmul.f32 %v369, %v429
        %v625 = vmul.f32 %v370, %v430
        %v626 = vmul.f32 %v371, %v431
        %v627 = vmul.f32 %v372, %v432
        %v628 = vmul.f32 %v373, %v433
        %v629 = vmul.f32 %v374, %v434
        %v630 = vmul.f32 %v375, %v435
        %v631 = vmul.f32 %v376, %v436
        %v632 = vmul.f32 %v377, %v437
        %v633 = vmul.f32 %v378, %v438
        %v634 = vmul.f32 %v379, %v424
        %v635 = vmul.f32 %v380, %v425
        %v636 = vmul.f32 %v381, %v426
        %v637 = vmul.f32 %v382, %v427
        %v638 = vmul.f32 %v383, %v428
        %v639 = vmul.f32 %v384, %v429
        %v640 = vmul.f32 %v385, %v430
        %v641 = vmul.f32 %v386, %v431
        %v642 = vmul.f32 %v387, %v432
        %v643 = vmul.f32 %v388, %v433
        %v644 = vmul.f32 %v389, %v434
        %v645 = vmul.f32 %v390, %v435
        %v646 = vmul.f32 %v391, %v436
        %v647 = vmul.f32 %v392, %v437
        %v648 = vmul.f32 %v393, %v438
        %v649 = vmul.f32 %v394, %v424
        %v650 = vmul.f32 %v395, %v425
        %v651 = vmul.f32 %v396, %v426
        %v652 = vmul.f32 %v397, %v427
        %v653 = vmul.f32 %v398, %v428
        %v654 = vmul.f32 %v399, %v429
        %v655 = vmul.f32 %v400, %v430
        %v656 = vmul.f32 %v401, %v431
        %v657 = vmul.f32 %v402, %v432
        %v658 = vmul.f32 %v403, %v433
        %v659 = vmul.f32 %v404, %v434
        %v660 = vmul.f32 %v405, %v435
        %v661 = vmul.f32 %v406, %v436
        %v662 = vmul.f32 %v407, %v437
        %v663 = vmul.f32 %v408, %v438
        %v664 = vmul.f32 %v409, %v424
        %v665 = vmul.f32 %v410, %v425
        %v666 = vmul.f32 %v411, %v426
        %v667 = vmul.f32 %v412, %v427
        %v668 = vmul.f32 %v413, %v428
        %v669 = vmul.f32 %v414, %v429
        %v670 = vmul.f32 %v415, %v430
        %v671 = vmul.f32 %v416, %v431
        %v672 = vmul.f32 %v417, %v432
        %v673 = vmul.f32 %v418, %v433
        %v674 = vmul.f32 %v419, %v434
        %v675 = vmul.f32 %v420, %v435
        %v676 = vmul.f32 %v421, %v436
        %v677 = vmul.f32 %v422, %v437
        %v678 = vmul.f32 %v423, %v438
        %v679 = vadd.f32 %v439, %v440
        %v680 = vadd.f32 %v679, %v441
        %v681 = vadd.f32 %v680, %v442
        %v682 = vadd.f32 %v681, %v443
        %v683 = vadd.f32 %v682, %v444
        %v684 = vadd.f32 %v683, %v445
        %v685 = vadd.f32 %v684, %v446
        %v686 = vadd.f32 %v685, %v447
        %v687 = vadd.f32 %v686, %v448
        %v688 = vadd.f32 %v687, %v449
        %v689 = vadd.f32 %v688, %v450
        %v690 = vadd.f32 %v689, %v451
        %v691 = vadd.f32 %v690, %v452
        %v692 = vadd.f32 %v691, %v453
        %v693 = vrot.slane %v692, 4
        %v694 = vadd.f32 %v692, %v693
        %v695 = vrot.slane %v694, 2
        %v696 = vadd.f32 %v694, %v695
        %v697 = vrot.slane %v696, 1
        %v698 = vadd.f32 %v696, %v697
        %v699 = vadd.f32 %v454, %v455
        %v700 = vadd.f32 %v699, %v456
        %v701 = vadd.f32 %v700, %v457
        %v702 = vadd.f32 %v701, %v458
        %v703 = vadd.f32 %v702, %v459
        %v704 = vadd.f32 %v703, %v460
        %v705 = vadd.f32 %v704, %v461
        %v706 = vadd.f32 %v705, %v462
        %v707 = vadd.f32 %v706, %v463
        %v708 = vadd.f32 %v707, %v464
        %v709 = vadd.f32 %v708, %v465
        %v710 = vadd.f32 %v709, %v466
        %v711 = vadd.f32 %v710, %v467
        %v712 = vadd.f32 %v711, %v468
        %v713 = vrot.slane %v712, 4
        %v714 = vadd.f32 %v712, %v713
        %v715 = vrot.slane %v714, 2
        %v716 = vadd.f32 %v714, %v715
        %v717 = vrot.slane %v716, 1
        %v718 = vadd.f32 %v716, %v717
        %v719 = vadd.f32 %v469, %v470
        %v720 = vadd.f32 %v719, %v471
        %v721 = vadd.f32 %v720, %v472
        %v722 = vadd.f32 %v721, %v473
        %v723 = vadd.f32 %v722, %v474
        %v724 = vadd.f32 %v723, %v475
        %v725 = vadd.f32 %v724, %v476
        %v726 = vadd.f32 %v725, %v477
        %v727 = vadd.f32 %v726, %v478
        %v728 = vadd.f32 %v727, %v479
        %v729 = vadd.f32 %v728, %v480
        %v730 = vadd.f32 %v729, %v481
        %v731 = vadd.f32 %v730, %v482
        %v732 = vadd.f32 %v731, %v483
        %v733 = vrot.slane %v732, 4
        %v734 = vadd.f32 %v732, %v733
        %v735 = vrot.slane %v734, 2
        %v736 = vadd.f32 %v734, %v735
        %v737 = vrot.slane %v736, 1
        %v738 = vadd.f32 %v736, %v737
        %v739 = vadd.f32 %v484, %v485
        %v740 = vadd.f32 %v739, %v486
        %v741 = vadd.f32 %v740, %v487
        %v742 = vadd.f32 %v741, %v488
        %v743 = vadd.f32 %v742, %v489
        %v744 = vadd.f32 %v743, %v490
        %v745 = vadd.f32 %v744, %v491
        %v746 = vadd.f32 %v745, %v492
        %v747 = vadd.f32 %v746, %v493
        %v748 = vadd.f32 %v747, %v494
        %v749 = vadd.f32 %v748, %v495
        %v750 = vadd.f32 %v749, %v496
        %v751 = vadd.f32 %v750, %v497
        %v752 = vadd.f32 %v751, %v498
        %v753 = vrot.slane %v752, 4
        %v754 = vadd.f32 %v752, %v753
        %v755 = vrot.slane %v754, 2
        %v756 = vadd.f32 %v754, %v755
        %v757 = vrot.slane %v756, 1
        %v758 = vadd.f32 %v756, %v757
        %v759 = vadd.f32 %v499, %v500
        %v760 = vadd.f32 %v759, %v501
        %v761 = vadd.f32 %v760, %v502
        %v762 = vadd.f32 %v761, %v503
        %v763 = vadd.f32 %v762, %v504
        %v764 = vadd.f32 %v763, %v505
        %v765 = vadd.f32 %v764, %v506
        %v766 = vadd.f32 %v765, %v507
        %v767 = vadd.f32 %v766, %v508
        %v768 = vadd.f32 %v767, %v509
        %v769 = vadd.f32 %v768, %v510
        %v770 = vadd.f32 %v769, %v511
        %v771 = vadd.f32 %v770, %v512
        %v772 = vadd.f32 %v771, %v513
        %v773 = vrot.slane %v772, 4
        %v774 = vadd.f32 %v772, %v773
        %v775 = vrot.slane %v774, 2
        %v776 = vadd.f32 %v774, %v775
        %v777 = vrot.slane %v776, 1
        %v778 = vadd.f32 %v776, %v777
        %v779 = vadd.f32 %v514, %v515
        %v780 = vadd.f32 %v779, %v516
        %v781 = vadd.f32 %v780, %v517
        %v782 = vadd.f32 %v781, %v518
        %v783 = vadd.f32 %v782, %v519
        %v784 = vadd.f32 %v783, %v520
        %v785 = vadd.f32 %v784, %v521
        %v786 = vadd.f32 %v785, %v522
        %v787 = vadd.f32 %v786, %v523
        %v788 = vadd.f32 %v787, %v524
        %v789 = vadd.f32 %v788, %v525
        %v790 = vadd.f32 %v789, %v526
        %v791 = vadd.f32 %v790, %v527
        %v792 = vadd.f32 %v791, %v528
        %v793 = vrot.slane %v792, 4
        %v794 = vadd.f32 %v792, %v793
        %v795 = vrot.slane %v794, 2
        %v796 = vadd.f32 %v794, %v795
        %v797 = vrot.slane %v796, 1
        %v798 = vadd.f32 %v796, %v797
        %v799 = vadd.f32 %v529, %v530
        %v800 = vadd.f32 %v799, %v531
        %v801 = vadd.f32 %v800, %v532
        %v802 = vadd.f32 %v801, %v533
        %v803 = vadd.f32 %v802, %v534
        %v804 = vadd.f32 %v803, %v535
        %v805 = vadd.f32 %v804, %v536
        %v806 = vadd.f32 %v805, %v537
        %v807 = vadd.f32 %v806, %v538
        %v808 = vadd.f32 %v807, %v539
        %v809 = vadd.f32 %v808, %v540
        %v810 = vadd.f32 %v809, %v541
        %v811 = vadd.f32 %v810, %v542
        %v812 = vadd.f32 %v811, %v543
        %v813 = vrot.slane %v812, 4
        %v814 = vadd.f32 %v812, %v813
        %v815 = vrot.slane %v814, 2
        %v816 = vadd.f32 %v814, %v815
        %v817 = vrot.slane %v816, 1
        %v818 = vadd.f32 %v816, %v817
        %v819 = vadd.f32 %v544, %v545
        %v820 = vadd.f32 %v819, %v546
        %v821 = vadd.f32 %v820, %v547
        %v822 = vadd.f32 %v821, %v548
        %v823 = vadd.f32 %v822, %v549
        %v824 = vadd.f32 %v823, %v550
        %v825 = vadd.f32 %v824, %v551
        %v826 = vadd.f32 %v825, %v552
        %v827 = vadd.f32 %v826, %v553
        %v828 = vadd.f32 %v827, %v554
        %v829 = vadd.f32 %v828, %v555
        %v830 = vadd.f32 %v829, %v556
        %v831 = vadd.f32 %v830, %v557
        %v832 = vadd.f32 %v831, %v558
        %v833 = vrot.slane %v832, 4
        %v834 = vadd.f32 %v832, %v833
        %v835 = vrot.slane %v834, 2
        %v836 = vadd.f32 %v834, %v835
        %v837 = vrot.slane %v836, 1
        %v838 = vadd.f32 %v836, %v837
        %v839 = vadd.f32 %v559, %v560
        %v840 = vadd.f32 %v839, %v561
        %v841 = vadd.f32 %v840, %v562
        %v842 = vadd.f32 %v841, %v563
        %v843 = vadd.f32 %v842, %v564
        %v844 = vadd.f32 %v843, %v565
        %v845 = vadd.f32 %v844, %v566
        %v846 = vadd.f32 %v845, %v567
        %v847 = vadd.f32 %v846, %v568
        %v848 = vadd.f32 %v847, %v569
        %v849 = vadd.f32 %v848, %v570
        %v850 = vadd.f32 %v849, %v571
        %v851 = vadd.f32 %v850, %v572
        %v852 = vadd.f32 %v851, %v573
        %v853 = vrot.slane %v852, 4
        %v854 = vadd.f32 %v852, %v853
        %v855 = vrot.slane %v854, 2
        %v856 = vadd.f32 %v854, %v855
        %v857 = vrot.slane %v856, 1
        %v858 = vadd.f32 %v856, %v857
        %v859 = vadd.f32 %v574, %v575
        %v860 = vadd.f32 %v859, %v576
        %v861 = vadd.f32 %v860, %v577
        %v862 = vadd.f32 %v861, %v578
        %v863 = vadd.f32 %v862, %v579
        %v864 = vadd.f32 %v863, %v580
        %v865 = vadd.f32 %v864, %v581
        %v866 = vadd.f32 %v865, %v582
        %v867 = vadd.f32 %v866, %v583
        %v868 = vadd.f32 %v867, %v584
        %v869 = vadd.f32 %v868, %v585
        %v870 = vadd.f32 %v869, %v586
        %v871 = vadd.f32 %v870, %v587
        %v872 = vadd.f32 %v871, %v588
        %v873 = vrot.slane %v872, 4
        %v874 = vadd.f32 %v872, %v873
        %v875 = vrot.slane %v874, 2
        %v876 = vadd.f32 %v874, %v875
        %v877 = vrot.slane %v876, 1
        %v878 = vadd.f32 %v876, %v877
        %v879 = vadd.f32 %v589, %v590
        %v880 = vadd.f32 %v879, %v591
        %v881 = vadd.f32 %v880, %v592
        %v882 = vadd.f32 %v881, %v593
        %v883 = vadd.f32 %v882, %v594
        %v884 = vadd.f32 %v883, %v595
        %v885 = vadd.f32 %v884, %v596
        %v886 = vadd.f32 %v885, %v597
        %v887 = vadd.f32 %v886, %v598
        %v888 = vadd.f32 %v887, %v599
        %v889 = vadd.f32 %v888, %v600
        %v890 = vadd.f32 %v889, %v601
        %v891 = vadd.f32 %v890, %v602
        %v892 = vadd.f32 %v891, %v603
        %v893 = vrot.slane %v892, 4
        %v894 = vadd.f32 %v892, %v893
        %v895 = vrot.slane %v894, 2
        %v896 = vadd.f32 %v894, %v895
        %v897 = vrot.slane %v896, 1
        %v898 = vadd.f32 %v896, %v897
        %v899 = vadd.f32 %v604, %v605
        %v900 = vadd.f32 %v899, %v606
        %v901 = vadd.f32 %v900, %v607
        %v902 = vadd.f32 %v901, %v608
        %v903 = vadd.f32 %v902, %v609
        %v904 = vadd.f32 %v903, %v610
        %v905 = vadd.f32 %v904, %v611
        %v906 = vadd.f32 %v905, %v612
        %v907 = vadd.f32 %v906, %v613
        %v908 = vadd.f32 %v907, %v614
        %v909 = vadd.f32 %v908, %v615
        %v910 = vadd.f32 %v909, %v616
        %v911 = vadd.f32 %v910, %v617
        %v912 = vadd.f32 %v911, %v618
        %v913 = vrot.slane %v912, 4
        %v914 = vadd.f32 %v912, %v913
        %v915 = vrot.slane %v914, 2
        %v916 = vadd.f32 %v914, %v915
        %v917 = vrot.slane %v916, 1
        %v918 = vadd.f32 %v916, %v917
        %v919 = vadd.f32 %v619, %v620
        %v920 = vadd.f32 %v919, %v621
        %v921 = vadd.f32 %v920, %v622
        %v922 = vadd.f32 %v921, %v623
        %v923 = vadd.f32 %v922, %v624
        %v924 = vadd.f32 %v923, %v625
        %v925 = vadd.f32 %v924, %v626
        %v926 = vadd.f32 %v925, %v627
        %v927 = vadd.f32 %v926, %v628
        %v928 = vadd.f32 %v927, %v629
        %v929 = vadd.f32 %v928, %v630
        %v930 = vadd.f32 %v929, %v631
        %v931 = vadd.f32 %v930, %v632
        %v932 = vadd.f32 %v931, %v633
        %v933 = vrot.slane %v932, 4
        %v934 = vadd.f32 %v932, %v933
        %v935 = vrot.slane %v934, 2
        %v936 = vadd.f32 %v934, %v935
        %v937 = vrot.slane %v936, 1
        %v938 = vadd.f32 %v936, %v937
        %v939 = vadd.f32 %v634, %v635
        %v940 = vadd.f32 %v939, %v636
        %v941 = vadd.f32 %v940, %v637
        %v942 = vadd.f32 %v941, %v638
        %v943 = vadd.f32 %v942, %v639
        %v944 = vadd.f32 %v943, %v640
        %v945 = vadd.f32 %v944, %v641
        %v946 = vadd.f32 %v945, %v642
        %v947 = vadd.f32 %v946, %v643
        %v948 = vadd.f32 %v947, %v644
        %v949 = vadd.f32 %v948, %v645
        %v950 = vadd.f32 %v949, %v646
        %v951 = vadd.f32 %v950, %v647
        %v952 = vadd.f32 %v951, %v648
        %v953 = vrot.slane %v952, 4
        %v954 = vadd.f32 %v952, %v953
        %v955 = vrot.slane %v954, 2
        %v956 = vadd.f32 %v954, %v955
        %v957 = vrot.slane %v956, 1
        %v958 = vadd.f32 %v956, %v957
        %v959 = vadd.f32 %v649, %v650
        %v960 = vadd.f32 %v959, %v651
        %v961 = vadd.f32 %v960, %v652
        %v962 = vadd.f32 %v961, %v653
        %v963 = vadd.f32 %v962, %v654
        %v964 = vadd.f32 %v963, %v655
        %v965 = vadd.f32 %v964, %v656
        %v966 = vadd.f32 %v965, %v657
        %v967 = vadd.f32 %v966, %v658
        %v968 = vadd.f32 %v967, %v659
        %v969 = vadd.f32 %v968, %v660
        %v970 = vadd.f32 %v969, %v661
        %v971 = vadd.f32 %v970, %v662
        %v972 = vadd.f32 %v971, %v663
        %v973 = vrot.slane %v972, 4
        %v974 = vadd.f32 %v972, %v973
        %v975 = vrot.slane %v974, 2
        %v976 = vadd.f32 %v974, %v975
        %v977 = vrot.slane %v976, 1
        %v978 = vadd.f32 %v976, %v977
        %v979 = vadd.f32 %v664, %v665
        %v980 = vadd.f32 %v979, %v666
        %v981 = vadd.f32 %v980, %v667
        %v982 = vadd.f32 %v981, %v668
        %v983 = vadd.f32 %v982, %v669
        %v984 = vadd.f32 %v983, %v670
        %v985 = vadd.f32 %v984, %v671
        %v986 = vadd.f32 %v985, %v672
        %v987 = vadd.f32 %v986, %v673
        %v988 = vadd.f32 %v987, %v674
        %v989 = vadd.f32 %v988, %v675
        %v990 = vadd.f32 %v989, %v676
        %v991 = vadd.f32 %v990, %v677
        %v992 = vadd.f32 %v991, %v678
        %v993 = vrot.slane %v992, 4
        %v994 = vadd.f32 %v992, %v993
        %v995 = vrot.slane %v994, 2
        %v996 = vadd.f32 %v994, %v995
        %v997 = vrot.slane %v996, 1
        %v998 = vadd.f32 %v996, %v997
        %vm1015 = vcmask 1041409
        %v1016 = vsel %vm1015, %v718, %v698
        %vm1017 = vcmask 1042434
        %v1018 = vsel %vm1017, %v738, %v1016
        %vm1019 = vcmask 1043459
        %v1020 = vsel %vm1019, %v758, %v1018
        %vm1021 = vcmask 1044484
        %v1022 = vsel %vm1021, %v778, %v1020
        %vm1023 = vcmask 1045509
        %v1024 = vsel %vm1023, %v798, %v1022
        %vm1025 = vcmask 1046534
        %v1026 = vsel %vm1025, %v818, %v1024
        %vm1027 = vcmask 1047559
        %v1028 = vsel %vm1027, %v838, %v1026
        %v1029 = vsel %vm1015, %v878, %v858
        %v1030 = vsel %vm1017, %v898, %v1029
        %v1031 = vsel %vm1019, %v918, %v1030
        %v1032 = vsel %vm1021, %v938, %v1031
        %v1033 = vsel %vm1023, %v958, %v1032
        %v1034 = vsel %vm1025, %v978, %v1033
        %v1035 = vsel %vm1027, %v998, %v1034
        %1038 = vst [vmem:[%s181] sm:$0xff] %v1028
        %1039 = vst [vmem:[%s181 + $0x8] sm:$0xff] %v1035
        %s1040 = sand.u32 %s75, 1
        %s1041 = scalar_lea.sflag [#allocation4], %s1040
        %s1042 = sand.u32 %s75, 1
        %s1043 = smul.addr %s1042, 16
        %s1044 = scalar_lea.vmem [#allocation7], %s1043
        // Predicated region
        $region37: #{tpu_custom_call.1} parent=27 // pred_check
          %p1045 = pneg %p85
        $region38: #{tpu_custom_call.1} parent=27 // pred_check_branch
          %1047 = sbr.rel (%p1045) target = $region40
        $region39: #{tpu_custom_call.1} parent=27 // pred_region
          %s1048 = smul.u32 2, %s20
          %1050 = vsyncadd %s1041, 0
          %s1051 = smul.addr %s1048, 8
          %s1052 = scalar_lea.hbm %s2, %s1051
          %s1053 = sshll.u32 %s1044, 4
          %s1054 = int_to_ptr.vmem [resolvable:$true] %s1053
          %s1055 = sshll.u32 %s1052, 4
          %s1056 = int_to_ptr.hbm [resolvable:$true] %s1055
          %1061 = dma.vmem_to_hbm [thread:$0]  %s1054, 256, %s1056, %s1041, 128, 128, 8
        $region40: #{tpu_custom_call.1} parent=27 // pred_fallthru
          _
      $region28: #{tpu_custom_call.1} parent=5 // pred_fallthru
        _
      %p1062 = scmp.le.s32.totalorder 2, %s15
      // Predicated region
      $region41: #{tpu_custom_call.1} parent=5 // pred_check
        %p1063 = pneg %p1062
      $region42: #{tpu_custom_call.1} parent=5 // pred_check_branch
        %1065 = sbr.rel (%p1063) target = $region44
      $region43: #{tpu_custom_call.1} parent=5 // pred_region
        %s1066 = ssub.s32 %s15, 2
        // Predicated region
        $region45: #{tpu_custom_call.1} parent=43 // pred_check
          %p1067 = pneg %p91
        $region46: #{tpu_custom_call.1} parent=43 // pred_check_branch
          %1069 = sbr.rel (%p1067) target = $region48
        $region47: #{tpu_custom_call.1} parent=43 // pred_region
          %s1070 = sand.u32 %s76, 1
          %s1071 = scalar_lea.sflag [#allocation4], %s1070
          %s1072 = sand.u32 %s76, 1
          %s1073 = smul.addr %s1072, 16
          %s1074 = scalar_lea.vmem [#allocation7], %s1073
          %1076 = dma.done %s1071, 256
        $region48: #{tpu_custom_call.1} parent=43 // pred_fallthru
          _
      $region44: #{tpu_custom_call.1} parent=5 // pred_fallthru
        _
    $region6: #{tpu_custom_call.1} parent=1 // loop_footer
      %s19 = sadd.s32 1, %s15
    $region7: #{tpu_custom_call.1} parent=1 // loop_footer_branch
      %14 = sbr.rel target = $region3
    $region8: #{tpu_custom_call.1} parent=1 // loop_exit
      _
    %1077 = vsyncpa [#allocation3], 1
    %s1078 = scalar_lea.sflag [#allocation3], 1
    %1079 = vsyncpa %s1078, 1
    %1080 = vsyncpa [#allocation6], 1
    %s1081 = scalar_lea.sflag [#allocation6], 1
    %1082 = vsyncpa %s1081, 1
    %1083 = vsyncpa [#allocation4], 1
    %s1084 = scalar_lea.sflag [#allocation4], 1
    %1085 = vsyncpa %s1084, 1

</llo_original>
